<compile_context>
chip_gen: v7x
topology: tpu7x:2x2x1
jax: 0.10.0
libtpu: 0.0.40
codegen_flags: <defaults>
</compile_context>

<pallas_src>
import jax
import jax.numpy as jnp
import numpy as np
from jax.experimental import pallas as pl
from jax.experimental.pallas import tpu as pltpu

BN_EPS = 1e-5


def _make_kernel(n, h, w, cin, cout):
    """Build the fused conv+BN+ReLU kernel, specialized on static shapes."""
    nh = n * h
    w_cout = w * cout
    inv_count = 1.0 / float(n * h * w)   # BN averages over N*H*W per channel

    def kernel(x_ref, a_ref, m_ref, bias_ref, gamma_ref, beta_ref, o_ref):
        # x_ref:     (N*H, W*Cin)        bf16  rows of the (unpadded) NHWC image
        # a_ref:     (3, N*H, N*H)       bf16  0/1 vertical (kh) shift matrices
        # m_ref:     (3, W*Cin, W*Cout)  bf16  banded conv weights (kw, Cin folded)
        # bias/gamma/beta: (1, W*Cout)   f32   per-(w, cout)-lane tiled params
        # o_ref:     (N*H, W*Cout)       f32   lane-dense output
        x = x_ref[...]

        # ---- 3x3 conv: 3 MXU matmuls, bf16 operands, f32 accumulation -------
        acc = jnp.zeros((nh, w_cout), jnp.float32)
        for kh in range(3):
            # Row shift (with zero padding) on the MXU: A[kh] is 0/1, each row
            # has at most one nonzero, so the bf16 product is exact.
            xs = jnp.dot(a_ref[kh], x,
                         preferred_element_type=jnp.float32).astype(jnp.bfloat16)
            # Banded weight matmul folds the kw taps and Cin into one 64-deep
            # contraction; horizontal zero-padding is part of the band.
            acc = acc + jnp.dot(xs, m_ref[kh],
                                preferred_element_type=jnp.float32)

        acc = acc + bias_ref[...]   # conv bias (cancelled by BN; kept for fidelity)

        # ---- BatchNorm2d, training-mode (biased) batch statistics -----------
        # Channel c lives in lanes w*Cout + c.  Per-channel sums = cross-sublane
        # reduce over the 4-vreg accumulator, then a log2(W) lane-fold butterfly
        # of rolls with stride Cout (XLU slot, ~free) which leaves the
        # per-channel result replicated in every lane of that channel.
        def lane_fold(v):                       # v: (1, W*Cout)
            s = w_cout // 2
            while s >= cout:
                v = v + pltpu.roll(v, s, axis=1)
                s //= 2
            return v

        mean = lane_fold(jnp.sum(acc, axis=0, keepdims=True)) * inv_count
        centered = acc - mean                   # reused for var AND output
        var = lane_fold(jnp.sum(centered * centered, axis=0,
                                keepdims=True)) * inv_count
        scale = gamma_ref[...] * jax.lax.rsqrt(var + BN_EPS)

        # ---- affine + ReLU: lane-wise f32 VPU work ---------------------------
        y = centered * scale + beta_ref[...]
        o_ref[...] = jnp.maximum(y, 0.0)

    return kernel


@jax.jit
def conv_block(x_nchw, w_oihw, conv_bias, gamma, beta):
    """Fused Conv3x3(s=1, p=1) + BatchNorm2d(train) + ReLU.  NCHW in, NCHW out."""
    N, Cin, H, W = x_nchw.shape
    Cout = w_oihw.shape[0]
    NH, WCin, WCout = N * H, W * Cin, W * Cout
    assert W & (W - 1) == 0, "lane-fold butterfly assumes W is a power of two"

    # --- input: one fused transpose+reshape+cast HBM pass (no jnp.pad pass) ---
    x2d = (jnp.transpose(x_nchw, (0, 2, 3, 1))            # NHWC
           .reshape(NH, WCin)
           .astype(jnp.bfloat16))

    # --- weight packing (tiny, trace/compile-friendly) ------------------------
    # Banded matrices: M[kh, win*Cin+ci, wout*Cout+co] = w[kh, kw, ci, co] where
    # win == wout + kw - 1; entries outside [0, W) are simply absent, which
    # implements the horizontal zero padding.
    S = np.zeros((3, W, W), np.float32)
    for kw in range(3):
        for wout in range(W):
            win = wout + kw - 1
            if 0 <= win < W:
                S[kw, win, wout] = 1.0
    w_hwio = jnp.transpose(w_oihw, (2, 3, 1, 0)).astype(jnp.float32)  # (3,3,Cin,Cout)
    M = jnp.einsum("kuv,hkio->huivo", jnp.asarray(S), w_hwio)
    M = M.reshape(3, WCin, WCout).astype(jnp.bfloat16)

    # 0/1 vertical shift matrices (zero rows implement the vertical padding and
    # never mix rows across images).
    A = np.zeros((3, NH, NH), np.float32)
    for kh in range(3):
        for b in range(N):
            for hh in range(H):
                hs = hh + kh - 1
                if 0 <= hs < H:
                    A[kh, b * H + hh, b * H + hs] = 1.0
    A = jnp.asarray(A, dtype=jnp.bfloat16)

    # Pre-tiled per-lane parameter vectors -> pure lane-wise epilogue in-kernel.
    bias_t = jnp.tile(conv_bias.astype(jnp.float32), W).reshape(1, WCout)
    gamma_t = jnp.tile(gamma.astype(jnp.float32), W).reshape(1, WCout)
    beta_t = jnp.tile(beta.astype(jnp.float32), W).reshape(1, WCout)

    out2d = pl.pallas_call(
        _make_kernel(N, H, W, Cin, Cout),
        out_shape=jax.ShapeDtypeStruct((NH, WCout), jnp.float32),
        grid=(1,),
        in_specs=[
            pl.BlockSpec((NH, WCin), lambda i: (0, 0)),
            pl.BlockSpec((3, NH, NH), lambda i: (0, 0, 0)),
            pl.BlockSpec((3, WCin, WCout), lambda i: (0, 0, 0)),
            pl.BlockSpec((1, WCout), lambda i: (0, 0)),
            pl.BlockSpec((1, WCout), lambda i: (0, 0)),
            pl.BlockSpec((1, WCout), lambda i: (0, 0)),
        ],
        out_specs=pl.BlockSpec((NH, WCout), lambda i: (0, 0)),
        compiler_params=pltpu.CompilerParams(
            dimension_semantics=("arbitrary",)),
    )(x2d, A, M, bias_t, gamma_t, beta_t)

    # --- output: one fused reshape+transpose HBM pass back to NCHW ------------
    return jnp.transpose(out2d.reshape(N, H, W, Cout), (0, 3, 1, 2))


def _reference(x_nchw, w_oihw, conv_bias, gamma, beta, *, matmul_dtype=jnp.float32):
    """Pure-JAX reference matching PyTorch training-mode forward."""
    y = jax.lax.conv_general_dilated(
        x_nchw.astype(matmul_dtype), w_oihw.astype(matmul_dtype),
        window_strides=(1, 1), padding=((1, 1), (1, 1)),
        dimension_numbers=("NCHW", "OIHW", "NCHW"),
        preferred_element_type=jnp.float32)
    y = y + conv_bias.reshape(1, -1, 1, 1)
    mean = jnp.mean(y, axis=(0, 2, 3), keepdims=True)
    var = jnp.mean((y - mean) ** 2, axis=(0, 2, 3), keepdims=True)
    y = (y - mean) * jax.lax.rsqrt(var + BN_EPS)
    y = y * gamma.reshape(1, -1, 1, 1) + beta.reshape(1, -1, 1, 1)
    return jnp.maximum(y, 0.0)


if __name__ == "__main__":
    N, Cin, Cout, H, W = 2, 4, 8, 16, 16

    key = jax.random.PRNGKey(0)
    kx, kwt, kb, kg, kbt = jax.random.split(key, 5)

    x = jax.random.normal(kx, (N, Cin, H, W), jnp.float32)
    conv_w = 0.1 * jax.random.normal(kwt, (Cout, Cin, 3, 3), jnp.float32)
    conv_b = 0.1 * jax.random.normal(kb, (Cout,), jnp.float32)
    bn_gamma = 1.0 + 0.1 * jax.random.normal(kg, (Cout,), jnp.float32)
    bn_beta = 0.1 * jax.random.normal(kbt, (Cout,), jnp.float32)

    out = jax.block_until_ready(conv_block(x, conv_w, conv_b, bn_gamma, bn_beta))
    assert out.shape == (N, Cout, H, W), out.shape

    # Tight check vs. a reference using the same bf16-quantized conv operands
    # (f32 accumulation) -> verifies indexing / fusion exactly.
    ref_q = _reference(x, conv_w, conv_b, bn_gamma, bn_beta,
                       matmul_dtype=jnp.bfloat16)
    # Loose check vs. the full-f32 spec; tolerance sized for bf16 MXU operands
    # (the perf-recommended fast path on v6e/v7x).
    ref_f = _reference(x, conv_w, conv_b, bn_gamma, bn_beta,
                       matmul_dtype=jnp.float32)

    assert jnp.allclose(out, ref_q, atol=5e-3, rtol=5e-3), (
        float(jnp.max(jnp.abs(out - ref_q))))
    assert jnp.allclose(out, ref_f, atol=5e-2, rtol=5e-2), (
        float(jnp.max(jnp.abs(out - ref_f))))

    print("KERNEL_OK")
</pallas_src>

<mosaic_0001>
module attributes {stable_mosaic.version = 11 : i64} {
  func.func @kernel(%arg0: i32, %arg1: memref<32x64xbf16, #tpu.memory_space<vmem>>, %arg2: memref<3x32x32xbf16, #tpu.memory_space<vmem>>, %arg3: memref<3x64x128xbf16, #tpu.memory_space<vmem>>, %arg4: memref<1x128xf32, #tpu.memory_space<vmem>>, %arg5: memref<1x128xf32, #tpu.memory_space<vmem>>, %arg6: memref<1x128xf32, #tpu.memory_space<vmem>>, %arg7: memref<32x128xf32, #tpu.memory_space<vmem>>) attributes {dimension_semantics = [#tpu.dimension_semantics<arbitrary>], iteration_bounds = array<i64: 1>, scalar_prefetch = 0 : i64, scratch_operands = 0 : i64, tpu.core_type = #tpu.core_type<tc>, window_params = [{pipeline_mode = #tpu.pipeline_mode<synchronous>, transform_indices = @transform_0, window_bounds = array<i64: 32, 64>}, {pipeline_mode = #tpu.pipeline_mode<synchronous>, transform_indices = @transform_1, window_bounds = array<i64: 3, 32, 32>}, {pipeline_mode = #tpu.pipeline_mode<synchronous>, transform_indices = @transform_2, window_bounds = array<i64: 3, 64, 128>}, {pipeline_mode = #tpu.pipeline_mode<synchronous>, transform_indices = @transform_3, window_bounds = array<i64: 1, 128>}, {pipeline_mode = #tpu.pipeline_mode<synchronous>, transform_indices = @transform_4, window_bounds = array<i64: 1, 128>}, {pipeline_mode = #tpu.pipeline_mode<synchronous>, transform_indices = @transform_5, window_bounds = array<i64: 1, 128>}, {pipeline_mode = #tpu.pipeline_mode<synchronous>, transform_indices = @transform_6, window_bounds = array<i64: 32, 128>}]} {
    %c0 = arith.constant 0 : index
    %c0_0 = arith.constant 0 : index
    %0 = vector.load %arg1[%c0, %c0_0] : memref<32x64xbf16, #tpu.memory_space<vmem>>, vector<32x64xbf16>
    %cst = arith.constant 0.000000e+00 : f32
    %1 = vector.broadcast %cst : f32 to vector<32x128xf32>
    %c0_1 = arith.constant 0 : index
    %c0_2 = arith.constant 0 : index
    %c0_3 = arith.constant 0 : index
    %2 = vector.load %arg2[%c0_1, %c0_2, %c0_3] : memref<3x32x32xbf16, #tpu.memory_space<vmem>>, vector<1x32x32xbf16>
    %3 = vector.shape_cast %2 : vector<1x32x32xbf16> to vector<32x32xbf16>
    %cst_4 = arith.constant dense<0.000000e+00> : vector<32x64xf32>
    %4 = tpu.matmul %3, %0, %cst_4 {dimension_numbers = #tpu.dot_dimension_numbers<[1], [0], [0], [1], [0, 0, 1, 1], [], []>} : vector<32x32xbf16>, vector<32x64xbf16>, vector<32x64xf32> -> vector<32x64xf32>
    %5 = arith.truncf %4 : vector<32x64xf32> to vector<32x64xbf16>
    %c0_5 = arith.constant 0 : index
    %c0_6 = arith.constant 0 : index
    %c0_7 = arith.constant 0 : index
    %6 = vector.load %arg3[%c0_5, %c0_6, %c0_7] : memref<3x64x128xbf16, #tpu.memory_space<vmem>>, vector<1x64x128xbf16>
    %7 = vector.shape_cast %6 : vector<1x64x128xbf16> to vector<64x128xbf16>
    %cst_8 = arith.constant dense<0.000000e+00> : vector<32x128xf32>
    %8 = tpu.matmul %5, %7, %cst_8 {dimension_numbers = #tpu.dot_dimension_numbers<[1], [0], [0], [1], [0, 0, 1, 1], [], []>} : vector<32x64xbf16>, vector<64x128xbf16>, vector<32x128xf32> -> vector<32x128xf32>
    %9 = arith.addf %1, %8 : vector<32x128xf32>
    %c1 = arith.constant 1 : index
    %c0_9 = arith.constant 0 : index
    %c0_10 = arith.constant 0 : index
    %10 = vector.load %arg2[%c1, %c0_9, %c0_10] : memref<3x32x32xbf16, #tpu.memory_space<vmem>>, vector<1x32x32xbf16>
    %11 = vector.shape_cast %10 : vector<1x32x32xbf16> to vector<32x32xbf16>
    %cst_11 = arith.constant dense<0.000000e+00> : vector<32x64xf32>
    %12 = tpu.matmul %11, %0, %cst_11 {dimension_numbers = #tpu.dot_dimension_numbers<[1], [0], [0], [1], [0, 0, 1, 1], [], []>} : vector<32x32xbf16>, vector<32x64xbf16>, vector<32x64xf32> -> vector<32x64xf32>
    %13 = arith.truncf %12 : vector<32x64xf32> to vector<32x64xbf16>
    %c1_12 = arith.constant 1 : index
    %c0_13 = arith.constant 0 : index
    %c0_14 = arith.constant 0 : index
    %14 = vector.load %arg3[%c1_12, %c0_13, %c0_14] : memref<3x64x128xbf16, #tpu.memory_space<vmem>>, vector<1x64x128xbf16>
    %15 = vector.shape_cast %14 : vector<1x64x128xbf16> to vector<64x128xbf16>
    %cst_15 = arith.constant dense<0.000000e+00> : vector<32x128xf32>
    %16 = tpu.matmul %13, %15, %cst_15 {dimension_numbers = #tpu.dot_dimension_numbers<[1], [0], [0], [1], [0, 0, 1, 1], [], []>} : vector<32x64xbf16>, vector<64x128xbf16>, vector<32x128xf32> -> vector<32x128xf32>
    %17 = arith.addf %9, %16 : vector<32x128xf32>
    %c2 = arith.constant 2 : index
    %c0_16 = arith.constant 0 : index
    %c0_17 = arith.constant 0 : index
    %18 = vector.load %arg2[%c2, %c0_16, %c0_17] : memref<3x32x32xbf16, #tpu.memory_space<vmem>>, vector<1x32x32xbf16>
    %19 = vector.shape_cast %18 : vector<1x32x32xbf16> to vector<32x32xbf16>
    %cst_18 = arith.constant dense<0.000000e+00> : vector<32x64xf32>
    %20 = tpu.matmul %19, %0, %cst_18 {dimension_numbers = #tpu.dot_dimension_numbers<[1], [0], [0], [1], [0, 0, 1, 1], [], []>} : vector<32x32xbf16>, vector<32x64xbf16>, vector<32x64xf32> -> vector<32x64xf32>
    %21 = arith.truncf %20 : vector<32x64xf32> to vector<32x64xbf16>
    %c2_19 = arith.constant 2 : index
    %c0_20 = arith.constant 0 : index
    %c0_21 = arith.constant 0 : index
    %22 = vector.load %arg3[%c2_19, %c0_20, %c0_21] : memref<3x64x128xbf16, #tpu.memory_space<vmem>>, vector<1x64x128xbf16>
    %23 = vector.shape_cast %22 : vector<1x64x128xbf16> to vector<64x128xbf16>
    %cst_22 = arith.constant dense<0.000000e+00> : vector<32x128xf32>
    %24 = tpu.matmul %21, %23, %cst_22 {dimension_numbers = #tpu.dot_dimension_numbers<[1], [0], [0], [1], [0, 0, 1, 1], [], []>} : vector<32x64xbf16>, vector<64x128xbf16>, vector<32x128xf32> -> vector<32x128xf32>
    %25 = arith.addf %17, %24 : vector<32x128xf32>
    %c0_23 = arith.constant 0 : index
    %c0_24 = arith.constant 0 : index
    %26 = vector.load %arg4[%c0_23, %c0_24] : memref<1x128xf32, #tpu.memory_space<vmem>>, vector<1x128xf32>
    %27 = vector.broadcast %26 : vector<1x128xf32> to vector<32x128xf32>
    %28 = arith.addf %25, %27 : vector<32x128xf32>
    %cst_25 = arith.constant dense<0.000000e+00> : vector<128xf32>
    %29 = vector.multi_reduction <add>, %28, %cst_25 [0] : vector<32x128xf32> to vector<128xf32>
    %30 = vector.shape_cast %29 : vector<128xf32> to vector<1x128xf32>
    %c64_i32 = arith.constant 64 : i32
    %31 = tpu.dynamic_rotate %30 by %c64_i32 dim 1 : vector<1x128xf32>, i32 -> vector<1x128xf32>
    %32 = arith.addf %30, %31 : vector<1x128xf32>
    %c32_i32 = arith.constant 32 : i32
    %33 = tpu.dynamic_rotate %32 by %c32_i32 dim 1 : vector<1x128xf32>, i32 -> vector<1x128xf32>
    %34 = arith.addf %32, %33 : vector<1x128xf32>
    %c16_i32 = arith.constant 16 : i32
    %35 = tpu.dynamic_rotate %34 by %c16_i32 dim 1 : vector<1x128xf32>, i32 -> vector<1x128xf32>
    %36 = arith.addf %34, %35 : vector<1x128xf32>
    %c8_i32 = arith.constant 8 : i32
    %37 = tpu.dynamic_rotate %36 by %c8_i32 dim 1 : vector<1x128xf32>, i32 -> vector<1x128xf32>
    %38 = arith.addf %36, %37 : vector<1x128xf32>
    %cst_26 = arith.constant 0.001953125 : f32
    %39 = vector.broadcast %cst_26 : f32 to vector<1x128xf32>
    %40 = arith.mulf %38, %39 : vector<1x128xf32>
    %41 = vector.broadcast %40 : vector<1x128xf32> to vector<32x128xf32>
    %42 = arith.subf %28, %41 : vector<32x128xf32>
    %43 = arith.mulf %42, %42 : vector<32x128xf32>
    %cst_27 = arith.constant dense<0.000000e+00> : vector<128xf32>
    %44 = vector.multi_reduction <add>, %43, %cst_27 [0] : vector<32x128xf32> to vector<128xf32>
    %45 = vector.shape_cast %44 : vector<128xf32> to vector<1x128xf32>
    %c64_i32_28 = arith.constant 64 : i32
    %46 = tpu.dynamic_rotate %45 by %c64_i32_28 dim 1 : vector<1x128xf32>, i32 -> vector<1x128xf32>
    %47 = arith.addf %45, %46 : vector<1x128xf32>
    %c32_i32_29 = arith.constant 32 : i32
    %48 = tpu.dynamic_rotate %47 by %c32_i32_29 dim 1 : vector<1x128xf32>, i32 -> vector<1x128xf32>
    %49 = arith.addf %47, %48 : vector<1x128xf32>
    %c16_i32_30 = arith.constant 16 : i32
    %50 = tpu.dynamic_rotate %49 by %c16_i32_30 dim 1 : vector<1x128xf32>, i32 -> vector<1x128xf32>
    %51 = arith.addf %49, %50 : vector<1x128xf32>
    %c8_i32_31 = arith.constant 8 : i32
    %52 = tpu.dynamic_rotate %51 by %c8_i32_31 dim 1 : vector<1x128xf32>, i32 -> vector<1x128xf32>
    %53 = arith.addf %51, %52 : vector<1x128xf32>
    %cst_32 = arith.constant 0.001953125 : f32
    %54 = vector.broadcast %cst_32 : f32 to vector<1x128xf32>
    %55 = arith.mulf %53, %54 : vector<1x128xf32>
    %c0_33 = arith.constant 0 : index
    %c0_34 = arith.constant 0 : index
    %56 = vector.load %arg5[%c0_33, %c0_34] : memref<1x128xf32, #tpu.memory_space<vmem>>, vector<1x128xf32>
    %cst_35 = arith.constant 9.99999974E-6 : f32
    %57 = vector.broadcast %cst_35 : f32 to vector<1x128xf32>
    %58 = arith.addf %55, %57 : vector<1x128xf32>
    %59 = math.rsqrt %58 : vector<1x128xf32>
    %60 = arith.mulf %56, %59 : vector<1x128xf32>
    %61 = vector.broadcast %60 : vector<1x128xf32> to vector<32x128xf32>
    %62 = arith.mulf %42, %61 : vector<32x128xf32>
    %c0_36 = arith.constant 0 : index
    %c0_37 = arith.constant 0 : index
    %63 = vector.load %arg6[%c0_36, %c0_37] : memref<1x128xf32, #tpu.memory_space<vmem>>, vector<1x128xf32>
    %64 = vector.broadcast %63 : vector<1x128xf32> to vector<32x128xf32>
    %65 = arith.addf %62, %64 : vector<32x128xf32>
    %cst_38 = arith.constant 0.000000e+00 : f32
    %66 = vector.broadcast %cst_38 : f32 to vector<32x128xf32>
    %67 = arith.maximumf %65, %66 : vector<32x128xf32>
    %c0_39 = arith.constant 0 : index
    %c0_40 = arith.constant 0 : index
    %68 = vector.load %arg7[%c0_39, %c0_40] : memref<32x128xf32, #tpu.memory_space<vmem>>, vector<32x128xf32>
    tpu.vector_store %arg7[%c0_39, %c0_40], %67 {strides = array<i32>} : memref<32x128xf32, #tpu.memory_space<vmem>>, vector<32x128xf32>,
    return
  }
  func.func @transform_0(%arg0: i32) -> (i32, i32) {
    %c0_i32 = arith.constant 0 : i32
    %c0_i32_0 = arith.constant 0 : i32
    %c0_i32_1 = arith.constant 0 : i32
    return %c0_i32, %c0_i32_0 : i32, i32
  }
  func.func @transform_1(%arg0: i32) -> (i32, i32, i32) {
    %c0_i32 = arith.constant 0 : i32
    %c0_i32_0 = arith.constant 0 : i32
    %c0_i32_1 = arith.constant 0 : i32
    %c0_i32_2 = arith.constant 0 : i32
    return %c0_i32, %c0_i32_0, %c0_i32_1 : i32, i32, i32
  }
  func.func @transform_2(%arg0: i32) -> (i32, i32, i32) {
    %c0_i32 = arith.constant 0 : i32
    %c0_i32_0 = arith.constant 0 : i32
    %c0_i32_1 = arith.constant 0 : i32
    %c0_i32_2 = arith.constant 0 : i32
    return %c0_i32, %c0_i32_0, %c0_i32_1 : i32, i32, i32
  }
  func.func @transform_3(%arg0: i32) -> (i32, i32) {
    %c0_i32 = arith.constant 0 : i32
    %c0_i32_0 = arith.constant 0 : i32
    %c0_i32_1 = arith.constant 0 : i32
    return %c0_i32, %c0_i32_0 : i32, i32
  }
  func.func @transform_4(%arg0: i32) -> (i32, i32) {
    %c0_i32 = arith.constant 0 : i32
    %c0_i32_0 = arith.constant 0 : i32
    %c0_i32_1 = arith.constant 0 : i32
    return %c0_i32, %c0_i32_0 : i32, i32
  }
  func.func @transform_5(%arg0: i32) -> (i32, i32) {
    %c0_i32 = arith.constant 0 : i32
    %c0_i32_0 = arith.constant 0 : i32
    %c0_i32_1 = arith.constant 0 : i32
    return %c0_i32, %c0_i32_0 : i32, i32
  }
  func.func @transform_6(%arg0: i32) -> (i32, i32) {
    %c0_i32 = arith.constant 0 : i32
    %c0_i32_0 = arith.constant 0 : i32
    %c0_i32_1 = arith.constant 0 : i32
    return %c0_i32, %c0_i32_0 : i32, i32
  }
}

</mosaic_0001>

<llo_original>
// kernel: tile.18
$region0: #{tile.18}
  #allocation0 [shape = 's32[1]{0}', space=sflag, size = 0x4, scoped, tag = 'scoped memory for tile.18']
  %s0 = inlined_call_operand.vmem [shape: f32[8], index: 0, kind: input, shape index: {}]
  %s1 = inlined_call_operand.vmem [shape: f32[16,8], index: 1, kind: output, shape index: {}]
  // Predicated region
  $region2: #{tile.18} parent=0 // pred_check
    _
  $region3: #{tile.18} parent=0 // pred_check_branch
    %3 = sbr.rel (0) target = $region5
  $region4: #{tile.18} parent=0 // pred_region
    _
  $region5: #{tile.18} parent=0 // pred_fallthru
    _
  %v4 = vld [vmem:[%s0] ss:$0 sm:$0xff]
  %5 = vst [vmem:[%s1] sm:$0xff] %v4
  %s6 = scalar_lea.vmem %s1, 8
  %7 = vst [vmem:[%s6] sm:$0xff] %v4

// kernel: tile.19
$region0: #{tile.19}
  %s0 = inlined_call_operand.vmem [shape: f32[16,8], index: 0, kind: input, shape index: {}]
  %s1 = inlined_call_operand.vmem [shape: f32[1,128], index: 1, kind: output, shape index: {}]
  $region1: #{tile.19} parent=0
    #allocation0 [shape = 'u8[4096]{0}', space=vmem, size = 0x1000, scoped, tag = 'scoped mem for output reshape']
    %v2 = vld [vmem:[%s0] sm:$0x1]
    %vm3 = vcmask 64512
    %4 = vst.msk [vmem:[#allocation0] sm:$0x1] %vm3, %v2
    %s5 = scalar_lea.vmem %s0, 15
    %v6 = vld [vmem:[%s5] sm:$0x1]
    %7 = vrot.lane.b32.xlu0 %v6, 120
    %v8 = vpop.permute.xlu0 %7
    %vm9 = vcmask 1048512
    %10 = vst.msk [vmem:[#allocation0] sm:$0x1] %vm9, %v8
    %s11 = scalar_lea.vmem %s0, 14
    %v12 = vld [vmem:[%s11] sm:$0x1]
    %13 = vrot.lane.b32.xlu0 %v12, 112
    %v14 = vpop.permute.xlu0 %13
    %vm15 = vcmask 982912
    %16 = vst.msk [vmem:[#allocation0] sm:$0x1] %vm15, %v14
    %s17 = scalar_lea.vmem %s0, 13
    %v18 = vld [vmem:[%s17] sm:$0x1]
    %19 = vrot.lane.b32.xlu0 %v18, 104
    %v20 = vpop.permute.xlu0 %19
    %vm21 = vcmask 917312
    %22 = vst.msk [vmem:[#allocation0] sm:$0x1] %vm21, %v20
    %s23 = scalar_lea.vmem %s0, 12
    %v24 = vld [vmem:[%s23] sm:$0x1]
    %25 = vrot.lane.b32.xlu0 %v24, 96
    %v26 = vpop.permute.xlu0 %25
    %vm27 = vcmask 851712
    %28 = vst.msk [vmem:[#allocation0] sm:$0x1] %vm27, %v26
    %s29 = scalar_lea.vmem %s0, 11
    %v30 = vld [vmem:[%s29] sm:$0x1]
    %31 = vrot.lane.b32.xlu0 %v30, 88
    %v32 = vpop.permute.xlu0 %31
    %vm33 = vcmask 786112
    %34 = vst.msk [vmem:[#allocation0] sm:$0x1] %vm33, %v32
    %s35 = scalar_lea.vmem %s0, 10
    %v36 = vld [vmem:[%s35] sm:$0x1]
    %37 = vrot.lane.b32.xlu0 %v36, 80
    %v38 = vpop.permute.xlu0 %37
    %vm39 = vcmask 720512
    %40 = vst.msk [vmem:[#allocation0] sm:$0x1] %vm39, %v38
    %s41 = scalar_lea.vmem %s0, 9
    %v42 = vld [vmem:[%s41] sm:$0x1]
    %43 = vrot.lane.b32.xlu0 %v42, 72
    %v44 = vpop.permute.xlu0 %43
    %vm45 = vcmask 654912
    %46 = vst.msk [vmem:[#allocation0] sm:$0x1] %vm45, %v44
    %s47 = scalar_lea.vmem %s0, 8
    %v48 = vld [vmem:[%s47] sm:$0x1]
    %49 = vrot.lane.b32.xlu0 %v48, 64
    %v50 = vpop.permute.xlu0 %49
    %vm51 = vcmask 589312
    %52 = vst.msk [vmem:[#allocation0] sm:$0x1] %vm51, %v50
    %s53 = scalar_lea.vmem %s0, 7
    %v54 = vld [vmem:[%s53] sm:$0x1]
    %55 = vrot.lane.b32.xlu0 %v54, 56
    %v56 = vpop.permute.xlu0 %55
    %vm57 = vcmask 523712
    %58 = vst.msk [vmem:[#allocation0] sm:$0x1] %vm57, %v56
    %s59 = scalar_lea.vmem %s0, 6
    %v60 = vld [vmem:[%s59] sm:$0x1]
    %61 = vrot.lane.b32.xlu0 %v60, 48
    %v62 = vpop.permute.xlu0 %61
    %vm63 = vcmask 458112
    %64 = vst.msk [vmem:[#allocation0] sm:$0x1] %vm63, %v62
    %s65 = scalar_lea.vmem %s0, 5
    %v66 = vld [vmem:[%s65] sm:$0x1]
    %67 = vrot.lane.b32.xlu0 %v66, 40
    %v68 = vpop.permute.xlu0 %67
    %vm69 = vcmask 392512
    %70 = vst.msk [vmem:[#allocation0] sm:$0x1] %vm69, %v68
    %s71 = scalar_lea.vmem %s0, 4
    %v72 = vld [vmem:[%s71] sm:$0x1]
    %73 = vrot.lane.b32.xlu0 %v72, 32
    %v74 = vpop.permute.xlu0 %73
    %vm75 = vcmask 326912
    %76 = vst.msk [vmem:[#allocation0] sm:$0x1] %vm75, %v74
    %s77 = scalar_lea.vmem %s0, 3
    %v78 = vld [vmem:[%s77] sm:$0x1]
    %79 = vrot.lane.b32.xlu0 %v78, 24
    %v80 = vpop.permute.xlu0 %79
    %vm81 = vcmask 261312
    %82 = vst.msk [vmem:[#allocation0] sm:$0x1] %vm81, %v80
    %s83 = scalar_lea.vmem %s0, 2
    %v84 = vld [vmem:[%s83] sm:$0x1]
    %85 = vrot.lane.b32.xlu0 %v84, 16
    %v86 = vpop.permute.xlu0 %85
    %vm87 = vcmask 195712
    %88 = vst.msk [vmem:[#allocation0] sm:$0x1] %vm87, %v86
    %s89 = scalar_lea.vmem %s0, 1
    %v90 = vld [vmem:[%s89] sm:$0x1]
    %91 = vrot.lane.b32.xlu0 %v90, 8
    %v92 = vpop.permute.xlu0 %91
    %vm93 = vcmask 130112
    %94 = vst.msk [vmem:[#allocation0] sm:$0x1] %vm93, %v92
    %s96 = sshllo.u32 0, 1
    %v98 = vld [vmem:[#allocation0] sm:%s96]
    %s99 = sshllo.u32 0, 1
    %100 = vst [vmem:[%s1] sm:%s99] %v98

// kernel: conv_block.1
$region0: #{conv_block.1}
  #allocation0 [shape = 'u32[]', space=smem, size = 0x4, offset = 0x4, fixed_abs, tag = 'smem constant byte address 0x4 - core index']
  #allocation1 [shape = 'u32[144,128]{1,0:T(1,128)}', space=vmem, size = 0x12000, scoped, tag = 'internal scratch']
  %s0 = inlined_call_operand.vmem [shape: bf16[32,64], index: 0, kind: input, shape index: {}]
  %s1 = inlined_call_operand.vmem [shape: bf16[3,32,32], index: 1, kind: input, shape index: {}]
  %s2 = inlined_call_operand.vmem [shape: bf16[3,64,128], index: 2, kind: input, shape index: {}]
  %s3 = inlined_call_operand.vmem [shape: f32[1,128], index: 3, kind: input, shape index: {}]
  %s4 = inlined_call_operand.vmem [shape: f32[1,128], index: 4, kind: input, shape index: {}]
  %s5 = inlined_call_operand.vmem [shape: f32[1,128], index: 5, kind: input, shape index: {}]
  %s6 = inlined_call_operand.vmem [shape: f32[32,128], index: 6, kind: output, shape index: {}]
  %s7 = sld [smem:[#allocation0]]
  $region34: #{conv_block.1} parent=0
    _
  %s9 = ssub.s32 1, %s7
  %s10 = scalar_select 0, %s9, %s7
  // Predicated region
  $region2: #{conv_block.1} parent=0 // pred_check
    _
  $region3: #{conv_block.1} parent=0 // pred_check_branch
    %12 = sbr.rel (0) target = $region5
  $region4: #{conv_block.1} parent=0 // pred_region
    _
  $region5: #{conv_block.1} parent=0 // pred_fallthru
    _
  // Predicated region
  $region6: #{conv_block.1} parent=0 // pred_check
    _
  $region7: #{conv_block.1} parent=0 // pred_check_branch
    %14 = sbr.rel (0) target = $region9
  $region8: #{conv_block.1} parent=0 // pred_region
    _
  $region9: #{conv_block.1} parent=0 // pred_fallthru
    _
  // Predicated region
  $region10: #{conv_block.1} parent=0 // pred_check
    _
  $region11: #{conv_block.1} parent=0 // pred_check_branch
    %16 = sbr.rel (0) target = $region13
  $region12: #{conv_block.1} parent=0 // pred_region
    _
  $region13: #{conv_block.1} parent=0 // pred_fallthru
    _
  // Predicated region
  $region14: #{conv_block.1} parent=0 // pred_check
    _
  $region15: #{conv_block.1} parent=0 // pred_check_branch
    %18 = sbr.rel (0) target = $region17
  $region16: #{conv_block.1} parent=0 // pred_region
    _
  $region17: #{conv_block.1} parent=0 // pred_fallthru
    _
  // Predicated region
  $region18: #{conv_block.1} parent=0 // pred_check
    _
  $region19: #{conv_block.1} parent=0 // pred_check_branch
    %20 = sbr.rel (0) target = $region21
  $region20: #{conv_block.1} parent=0 // pred_region
    _
  $region21: #{conv_block.1} parent=0 // pred_fallthru
    _
  // Predicated region
  $region22: #{conv_block.1} parent=0 // pred_check
    _
  $region23: #{conv_block.1} parent=0 // pred_check_branch
    %22 = sbr.rel (0) target = $region25
  $region24: #{conv_block.1} parent=0 // pred_region
    _
  $region25: #{conv_block.1} parent=0 // pred_fallthru
    _
  %v24 = vld [vmem:[%s0] sm:$0xf]
  %v25 = vld [vmem:[%s0 + $0x4] sm:$0xf]
  %v26 = vld [vmem:[%s0 + $0x8] sm:$0xf]
  %v27 = vld [vmem:[%s0 + $0xc] sm:$0xf]
  %v28 = vld [vmem:[%s1] sm:$0xf]
  %v29 = vld [vmem:[%s1 + $0x4] sm:$0xf]
  %v30 = vld [vmem:[%s1 + $0x8] sm:$0xf]
  %v31 = vld [vmem:[%s1 + $0xc] sm:$0xf]
  %v36 = vunpack.c.l.b16 %v28
  %v37 = vunpack.c.l.b16 %v29
  %v38 = vunpack.c.l.b16 %v30
  %v39 = vunpack.c.l.b16 %v31
  %v40 = vpack.c.b16 %v37, %v36
  %v41 = vpack.c.b16 %v39, %v38
  %v46 = vunpack.c.l.b16 %v24
  %v47 = vunpack.c.l.b16 %v25
  %v48 = vunpack.c.l.b16 %v26
  %v49 = vunpack.c.l.b16 %v27
  %v50 = vpack.c.b16 %v47, %v46
  %v51 = vpack.c.b16 %v49, %v48
  %vm54 = vcmask 261120
  %v56 = vsel %vm54, %v40, 0
  %v59 = vsel %vm54, %v41, 0
  %61 = vmatprep.subr.bf16.mxu0 0
  %62 = vmatpush1.bf16.msra.mxu0 %v50
  %63 = vmatprep.subr.bf16.mxu0 0
  %64 = vmatpush1.bf16.msra.mxu0 %v51
  %65 = vmatprep.subr.bf16.mxu0 0
  %66 = vmatpush1.bf16.msra.mxu0 0
  %67 = vmatprep.subr.bf16.mxu0 0
  %68 = vmatpush1.bf16.msra.mxu0 0
  %69 = vmatprep.subr.bf16.mxu0 0
  %70 = vmatpush1.bf16.msra.mxu0 0
  %71 = vmatprep.subr.bf16.mxu0 0
  %72 = vmatpush1.bf16.msra.mxu0 0
  %73 = vmatprep.subr.bf16.mxu0 0
  %74 = vmatpush1.bf16.msra.mxu0 0
  %75 = vmatprep.subr.bf16.mxu0 0
  %76 = vmatpush1.bf16.msra.mxu0 0
  %77 = vmatprep.subr.bf16.mxu0 0
  %78 = vmatpush1.bf16.msra.mxu0 0
  %79 = vmatprep.subr.bf16.mxu0 0
  %80 = vmatpush1.bf16.msra.mxu0 0
  %81 = vmatprep.subr.bf16.mxu0 0
  %82 = vmatpush1.bf16.msra.mxu0 0
  %83 = vmatprep.subr.bf16.mxu0 0
  %84 = vmatpush1.bf16.msra.mxu0 0
  %85 = vmatprep.subr.bf16.mxu0 0
  %86 = vmatpush1.bf16.msra.mxu0 0
  %87 = vmatprep.subr.bf16.mxu0 0
  %88 = vmatpush1.bf16.msra.mxu0 0
  %89 = vmatprep.subr.bf16.mxu0 0
  %90 = vmatpush1.bf16.msra.mxu0 0
  %91 = vmatprep.subr.bf16.mxu0 0
  %92 = vmatpush1.bf16.msra.mxu0 0
  %93 = vmatprep.mubr.bf16.mxu0 0
  %94 = vmatmul.mubr.bf16.gmra.mrb[0].mxu0 %v56
  %v95 = vpop.f32.mrb[0].mxu0
  %v96 = vadd.f32 0.0, %v95
  %v97 = vpop.f32.mrb[0].mxu0
  %v98 = vpop.f32.mrb[0].mxu0
  %v99 = vadd.f32 0.0, %v98
  %v100 = vpop.f32.mrb[0].mxu0
  %101 = vmatprep.mubr.bf16.mxu0 0
  %102 = vmatmul.mubr.bf16.gmra.mrb[0].mxu0 %v59
  %v103 = vpop.f32.mrb[0].mxu0
  %v104 = vadd.f32 0.0, %v103
  %v105 = vpop.f32.mrb[0].mxu0
  %v106 = vpop.f32.mrb[0].mxu0
  %v107 = vadd.f32 0.0, %v106
  %v108 = vpop.f32.mrb[0].mxu0
  %109 = vdwg.mxu0
  %v110 = vpack.c.bf16 %v99, %v96
  %v111 = vpack.c.bf16 %v107, %v104
  %v112 = vld [vmem:[%s2] sm:$0xf]
  %v113 = vld [vmem:[%s2 + $0x4] sm:$0xf]
  %v114 = vld [vmem:[%s2 + $0x8] sm:$0xf]
  %v115 = vld [vmem:[%s2 + $0xc] sm:$0xf]
  %v116 = vld [vmem:[%s2 + $0x10] sm:$0xf]
  %v117 = vld [vmem:[%s2 + $0x14] sm:$0xf]
  %v118 = vld [vmem:[%s2 + $0x18] sm:$0xf]
  %v119 = vld [vmem:[%s2 + $0x1c] sm:$0xf]
  %s120 = scalar_lea.vmem %s1, 16
  %v121 = vld [vmem:[%s120] sm:$0xf]
  %v122 = vld [vmem:[%s120 + $0x4] sm:$0xf]
  %v123 = vld [vmem:[%s120 + $0x8] sm:$0xf]
  %v124 = vld [vmem:[%s120 + $0xc] sm:$0xf]
  %v129 = vunpack.c.l.b16 %v121
  %v130 = vunpack.c.l.b16 %v122
  %v131 = vunpack.c.l.b16 %v123
  %v132 = vunpack.c.l.b16 %v124
  %v133 = vpack.c.b16 %v130, %v129
  %v134 = vpack.c.b16 %v132, %v131
  %v136 = vsel %vm54, %v133, 0
  %v139 = vsel %vm54, %v134, 0
  %141 = vmatprep.subr.bf16.mxu0 0
  %142 = vmatpush1.bf16.msra.mxu0 %v50
  %143 = vmatprep.subr.bf16.mxu0 0
  %144 = vmatpush1.bf16.msra.mxu0 %v51
  %145 = vmatprep.subr.bf16.mxu0 0
  %146 = vmatpush1.bf16.msra.mxu0 0
  %147 = vmatprep.subr.bf16.mxu0 0
  %148 = vmatpush1.bf16.msra.mxu0 0
  %149 = vmatprep.subr.bf16.mxu0 0
  %150 = vmatpush1.bf16.msra.mxu0 0
  %151 = vmatprep.subr.bf16.mxu0 0
  %152 = vmatpush1.bf16.msra.mxu0 0
  %153 = vmatprep.subr.bf16.mxu0 0
  %154 = vmatpush1.bf16.msra.mxu0 0
  %155 = vmatprep.subr.bf16.mxu0 0
  %156 = vmatpush1.bf16.msra.mxu0 0
  %157 = vmatprep.subr.bf16.mxu0 0
  %158 = vmatpush1.bf16.msra.mxu0 0
  %159 = vmatprep.subr.bf16.mxu0 0
  %160 = vmatpush1.bf16.msra.mxu0 0
  %161 = vmatprep.subr.bf16.mxu0 0
  %162 = vmatpush1.bf16.msra.mxu0 0
  %163 = vmatprep.subr.bf16.mxu0 0
  %164 = vmatpush1.bf16.msra.mxu0 0
  %165 = vmatprep.subr.bf16.mxu0 0
  %166 = vmatpush1.bf16.msra.mxu0 0
  %167 = vmatprep.subr.bf16.mxu0 0
  %168 = vmatpush1.bf16.msra.mxu0 0
  %169 = vmatprep.subr.bf16.mxu0 0
  %170 = vmatpush1.bf16.msra.mxu0 0
  %171 = vmatprep.subr.bf16.mxu0 0
  %172 = vmatpush1.bf16.msra.mxu0 0
  %173 = vmatprep.mubr.bf16.mxu0 0
  %174 = vmatmul.mubr.bf16.gmra.mrb[0].mxu0 %v136
  %v175 = vpop.f32.mrb[0].mxu0
  %v176 = vadd.f32 0.0, %v175
  %v177 = vpop.f32.mrb[0].mxu0
  %v178 = vpop.f32.mrb[0].mxu0
  %v179 = vadd.f32 0.0, %v178
  %v180 = vpop.f32.mrb[0].mxu0
  %181 = vmatprep.mubr.bf16.mxu0 0
  %182 = vmatmul.mubr.bf16.gmra.mrb[0].mxu0 %v139
  %v183 = vpop.f32.mrb[0].mxu0
  %v184 = vadd.f32 0.0, %v183
  %v185 = vpop.f32.mrb[0].mxu0
  %v186 = vpop.f32.mrb[0].mxu0
  %v187 = vadd.f32 0.0, %v186
  %v188 = vpop.f32.mrb[0].mxu0
  %189 = vdwg.mxu0
  %v190 = vpack.c.bf16 %v179, %v176
  %v191 = vpack.c.bf16 %v187, %v184
  %s192 = scalar_lea.vmem %s2, 32
  %v193 = vld [vmem:[%s192] sm:$0xf]
  %v194 = vld [vmem:[%s192 + $0x4] sm:$0xf]
  %v195 = vld [vmem:[%s192 + $0x8] sm:$0xf]
  %v196 = vld [vmem:[%s192 + $0xc] sm:$0xf]
  %v197 = vld [vmem:[%s192 + $0x10] sm:$0xf]
  %v198 = vld [vmem:[%s192 + $0x14] sm:$0xf]
  %v199 = vld [vmem:[%s192 + $0x18] sm:$0xf]
  %v200 = vld [vmem:[%s192 + $0x1c] sm:$0xf]
  %v209 = vunpack.c.l.b16 %v193
  %v210 = vunpack.c.l.b16 %v194
  %v211 = vunpack.c.l.b16 %v195
  %v212 = vunpack.c.l.b16 %v196
  %v213 = vunpack.c.l.b16 %v197
  %v214 = vunpack.c.l.b16 %v198
  %v215 = vunpack.c.l.b16 %v199
  %v216 = vunpack.c.l.b16 %v200
  %v217 = vpack.c.b16 %v210, %v209
  %v218 = vpack.c.b16 %v212, %v211
  %v219 = vpack.c.b16 %v214, %v213
  %v220 = vpack.c.b16 %v216, %v215
  %vm225 = vcmask 523264
  %v227 = vsel %vm225, %v190, 0
  %v230 = vsel %vm225, %v191, 0
  %232 = vmatprep.subr.bf16.mxu0 0
  %233 = vmatpush1.bf16.msra.mxu0 %v217
  %234 = vmatprep.subr.bf16.mxu0 0
  %235 = vmatpush1.bf16.msra.mxu0 %v218
  %236 = vmatprep.subr.bf16.mxu0 0
  %237 = vmatpush1.bf16.msra.mxu0 %v219
  %238 = vmatprep.subr.bf16.mxu0 0
  %239 = vmatpush1.bf16.msra.mxu0 %v220
  %240 = vmatprep.subr.bf16.mxu0 0
  %241 = vmatpush1.bf16.msra.mxu0 0
  %242 = vmatprep.subr.bf16.mxu0 0
  %243 = vmatpush1.bf16.msra.mxu0 0
  %244 = vmatprep.subr.bf16.mxu0 0
  %245 = vmatpush1.bf16.msra.mxu0 0
  %246 = vmatprep.subr.bf16.mxu0 0
  %247 = vmatpush1.bf16.msra.mxu0 0
  %248 = vmatprep.subr.bf16.mxu0 0
  %249 = vmatpush1.bf16.msra.mxu0 0
  %250 = vmatprep.subr.bf16.mxu0 0
  %251 = vmatpush1.bf16.msra.mxu0 0
  %252 = vmatprep.subr.bf16.mxu0 0
  %253 = vmatpush1.bf16.msra.mxu0 0
  %254 = vmatprep.subr.bf16.mxu0 0
  %255 = vmatpush1.bf16.msra.mxu0 0
  %256 = vmatprep.subr.bf16.mxu0 0
  %257 = vmatpush1.bf16.msra.mxu0 0
  %258 = vmatprep.subr.bf16.mxu0 0
  %259 = vmatpush1.bf16.msra.mxu0 0
  %260 = vmatprep.subr.bf16.mxu0 0
  %261 = vmatpush1.bf16.msra.mxu0 0
  %262 = vmatprep.subr.bf16.mxu0 0
  %263 = vmatpush1.bf16.msra.mxu0 0
  %264 = vmatprep.mubr.bf16.mxu0 0
  %265 = vmatmul.mubr.bf16.gmra.mrb[0].mxu0 %v227
  %v266 = vpop.f32.mrb[0].mxu0
  %v267 = vadd.f32 0.0, %v266
  %v268 = vpop.f32.mrb[0].mxu0
  %v269 = vpop.f32.mrb[0].mxu0
  %v270 = vadd.f32 0.0, %v269
  %v271 = vpop.f32.mrb[0].mxu0
  %272 = vmatprep.mubr.bf16.mxu0 0
  %273 = vmatmul.mubr.bf16.gmra.mrb[0].mxu0 %v230
  %v274 = vpop.f32.mrb[0].mxu0
  %v275 = vadd.f32 0.0, %v274
  %v276 = vpop.f32.mrb[0].mxu0
  %v277 = vpop.f32.mrb[0].mxu0
  %v278 = vadd.f32 0.0, %v277
  %v279 = vpop.f32.mrb[0].mxu0
  %280 = vdwg.mxu0
  %v289 = vunpack.c.l.b16 %v112
  %v290 = vunpack.c.l.b16 %v113
  %v291 = vunpack.c.l.b16 %v114
  %v292 = vunpack.c.l.b16 %v115
  %v293 = vunpack.c.l.b16 %v116
  %v294 = vunpack.c.l.b16 %v117
  %v295 = vunpack.c.l.b16 %v118
  %v296 = vunpack.c.l.b16 %v119
  %v297 = vpack.c.b16 %v290, %v289
  %v298 = vpack.c.b16 %v292, %v291
  %v299 = vpack.c.b16 %v294, %v293
  %v300 = vpack.c.b16 %v296, %v295
  %v306 = vsel %vm225, %v110, 0
  %v309 = vsel %vm225, %v111, 0
  %311 = vmatprep.subr.bf16.mxu0 0
  %312 = vmatpush1.bf16.msra.mxu0 %v297
  %313 = vmatprep.subr.bf16.mxu0 0
  %314 = vmatpush1.bf16.msra.mxu0 %v298
  %315 = vmatprep.subr.bf16.mxu0 0
  %316 = vmatpush1.bf16.msra.mxu0 %v299
  %317 = vmatprep.subr.bf16.mxu0 0
  %318 = vmatpush1.bf16.msra.mxu0 %v300
  %319 = vmatprep.subr.bf16.mxu0 0
  %320 = vmatpush1.bf16.msra.mxu0 0
  %321 = vmatprep.subr.bf16.mxu0 0
  %322 = vmatpush1.bf16.msra.mxu0 0
  %323 = vmatprep.subr.bf16.mxu0 0
  %324 = vmatpush1.bf16.msra.mxu0 0
  %325 = vmatprep.subr.bf16.mxu0 0
  %326 = vmatpush1.bf16.msra.mxu0 0
  %327 = vmatprep.subr.bf16.mxu0 0
  %328 = vmatpush1.bf16.msra.mxu0 0
  %329 = vmatprep.subr.bf16.mxu0 0
  %330 = vmatpush1.bf16.msra.mxu0 0
  %331 = vmatprep.subr.bf16.mxu0 0
  %332 = vmatpush1.bf16.msra.mxu0 0
  %333 = vmatprep.subr.bf16.mxu0 0
  %334 = vmatpush1.bf16.msra.mxu0 0
  %335 = vmatprep.subr.bf16.mxu0 0
  %336 = vmatpush1.bf16.msra.mxu0 0
  %337 = vmatprep.subr.bf16.mxu0 0
  %338 = vmatpush1.bf16.msra.mxu0 0
  %339 = vmatprep.subr.bf16.mxu0 0
  %340 = vmatpush1.bf16.msra.mxu0 0
  %341 = vmatprep.subr.bf16.mxu0 0
  %342 = vmatpush1.bf16.msra.mxu0 0
  %343 = vmatprep.mubr.bf16.mxu0 0
  %344 = vmatmul.mubr.bf16.gmra.mrb[0].mxu0 %v306
  %v345 = vpop.f32.mrb[0].mxu0
  %v346 = vadd.f32 %v267, %v345
  %v347 = vpop.f32.mrb[0].mxu0
  %v348 = vpop.f32.mrb[0].mxu0
  %v349 = vadd.f32 %v270, %v348
  %v350 = vpop.f32.mrb[0].mxu0
  %351 = vmatprep.mubr.bf16.mxu0 0
  %352 = vmatmul.mubr.bf16.gmra.mrb[0].mxu0 %v309
  %v353 = vpop.f32.mrb[0].mxu0
  %v354 = vadd.f32 %v275, %v353
  %v355 = vpop.f32.mrb[0].mxu0
  %v356 = vpop.f32.mrb[0].mxu0
  %v357 = vadd.f32 %v278, %v356
  %v358 = vpop.f32.mrb[0].mxu0
  %359 = vdwg.mxu0
  %s360 = scalar_lea.vmem %s1, 32
  %v361 = vld [vmem:[%s360] sm:$0xf]
  %v362 = vld [vmem:[%s360 + $0x4] sm:$0xf]
  %v363 = vld [vmem:[%s360 + $0x8] sm:$0xf]
  %v364 = vld [vmem:[%s360 + $0xc] sm:$0xf]
  %v369 = vunpack.c.l.b16 %v361
  %v370 = vunpack.c.l.b16 %v362
  %v371 = vunpack.c.l.b16 %v363
  %v372 = vunpack.c.l.b16 %v364
  %v373 = vpack.c.b16 %v370, %v369
  %v374 = vpack.c.b16 %v372, %v371
  %v376 = vsel %vm54, %v373, 0
  %v379 = vsel %vm54, %v374, 0
  %381 = vmatprep.subr.bf16.mxu0 0
  %382 = vmatpush1.bf16.msra.mxu0 %v50
  %383 = vmatprep.subr.bf16.mxu0 0
  %384 = vmatpush1.bf16.msra.mxu0 %v51
  %385 = vmatprep.subr.bf16.mxu0 0
  %386 = vmatpush1.bf16.msra.mxu0 0
  %387 = vmatprep.subr.bf16.mxu0 0
  %388 = vmatpush1.bf16.msra.mxu0 0
  %389 = vmatprep.subr.bf16.mxu0 0
  %390 = vmatpush1.bf16.msra.mxu0 0
  %391 = vmatprep.subr.bf16.mxu0 0
  %392 = vmatpush1.bf16.msra.mxu0 0
  %393 = vmatprep.subr.bf16.mxu0 0
  %394 = vmatpush1.bf16.msra.mxu0 0
  %395 = vmatprep.subr.bf16.mxu0 0
  %396 = vmatpush1.bf16.msra.mxu0 0
  %397 = vmatprep.subr.bf16.mxu0 0
  %398 = vmatpush1.bf16.msra.mxu0 0
  %399 = vmatprep.subr.bf16.mxu0 0
  %400 = vmatpush1.bf16.msra.mxu0 0
  %401 = vmatprep.subr.bf16.mxu0 0
  %402 = vmatpush1.bf16.msra.mxu0 0
  %403 = vmatprep.subr.bf16.mxu0 0
  %404 = vmatpush1.bf16.msra.mxu0 0
  %405 = vmatprep.subr.bf16.mxu0 0
  %406 = vmatpush1.bf16.msra.mxu0 0
  %407 = vmatprep.subr.bf16.mxu0 0
  %408 = vmatpush1.bf16.msra.mxu0 0
  %409 = vmatprep.subr.bf16.mxu0 0
  %410 = vmatpush1.bf16.msra.mxu0 0
  %411 = vmatprep.subr.bf16.mxu0 0
  %412 = vmatpush1.bf16.msra.mxu0 0
  %413 = vmatprep.mubr.bf16.mxu0 0
  %414 = vmatmul.mubr.bf16.gmra.mrb[0].mxu0 %v376
  %v415 = vpop.f32.mrb[0].mxu0
  %v416 = vadd.f32 0.0, %v415
  %v417 = vpop.f32.mrb[0].mxu0
  %v418 = vpop.f32.mrb[0].mxu0
  %v419 = vadd.f32 0.0, %v418
  %v420 = vpop.f32.mrb[0].mxu0
  %421 = vmatprep.mubr.bf16.mxu0 0
  %422 = vmatmul.mubr.bf16.gmra.mrb[0].mxu0 %v379
  %v423 = vpop.f32.mrb[0].mxu0
  %v424 = vadd.f32 0.0, %v423
  %v425 = vpop.f32.mrb[0].mxu0
  %v426 = vpop.f32.mrb[0].mxu0
  %v427 = vadd.f32 0.0, %v426
  %v428 = vpop.f32.mrb[0].mxu0
  %429 = vdwg.mxu0
  %v430 = vpack.c.bf16 %v419, %v416
  %v431 = vpack.c.bf16 %v427, %v424
  %s432 = scalar_lea.vmem %s2, 64
  %v433 = vld [vmem:[%s432] sm:$0xf]
  %v434 = vld [vmem:[%s432 + $0x4] sm:$0xf]
  %v435 = vld [vmem:[%s432 + $0x8] sm:$0xf]
  %v436 = vld [vmem:[%s432 + $0xc] sm:$0xf]
  %v437 = vld [vmem:[%s432 + $0x10] sm:$0xf]
  %v438 = vld [vmem:[%s432 + $0x14] sm:$0xf]
  %v439 = vld [vmem:[%s432 + $0x18] sm:$0xf]
  %v440 = vld [vmem:[%s432 + $0x1c] sm:$0xf]
  %v449 = vunpack.c.l.b16 %v433
  %v450 = vunpack.c.l.b16 %v434
  %v451 = vunpack.c.l.b16 %v435
  %v452 = vunpack.c.l.b16 %v436
  %v453 = vunpack.c.l.b16 %v437
  %v454 = vunpack.c.l.b16 %v438
  %v455 = vunpack.c.l.b16 %v439
  %v456 = vunpack.c.l.b16 %v440
  %v457 = vpack.c.b16 %v450, %v449
  %v458 = vpack.c.b16 %v452, %v451
  %v459 = vpack.c.b16 %v454, %v453
  %v460 = vpack.c.b16 %v456, %v455
  %v466 = vsel %vm225, %v430, 0
  %v469 = vsel %vm225, %v431, 0
  %471 = vmatprep.subr.bf16.mxu0 0
  %472 = vmatpush1.bf16.msra.mxu0 %v457
  %473 = vmatprep.subr.bf16.mxu0 0
  %474 = vmatpush1.bf16.msra.mxu0 %v458
  %475 = vmatprep.subr.bf16.mxu0 0
  %476 = vmatpush1.bf16.msra.mxu0 %v459
  %477 = vmatprep.subr.bf16.mxu0 0
  %478 = vmatpush1.bf16.msra.mxu0 %v460
  %479 = vmatprep.subr.bf16.mxu0 0
  %480 = vmatpush1.bf16.msra.mxu0 0
  %481 = vmatprep.subr.bf16.mxu0 0
  %482 = vmatpush1.bf16.msra.mxu0 0
  %483 = vmatprep.subr.bf16.mxu0 0
  %484 = vmatpush1.bf16.msra.mxu0 0
  %485 = vmatprep.subr.bf16.mxu0 0
  %486 = vmatpush1.bf16.msra.mxu0 0
  %487 = vmatprep.subr.bf16.mxu0 0
  %488 = vmatpush1.bf16.msra.mxu0 0
  %489 = vmatprep.subr.bf16.mxu0 0
  %490 = vmatpush1.bf16.msra.mxu0 0
  %491 = vmatprep.subr.bf16.mxu0 0
  %492 = vmatpush1.bf16.msra.mxu0 0
  %493 = vmatprep.subr.bf16.mxu0 0
  %494 = vmatpush1.bf16.msra.mxu0 0
  %495 = vmatprep.subr.bf16.mxu0 0
  %496 = vmatpush1.bf16.msra.mxu0 0
  %497 = vmatprep.subr.bf16.mxu0 0
  %498 = vmatpush1.bf16.msra.mxu0 0
  %499 = vmatprep.subr.bf16.mxu0 0
  %500 = vmatpush1.bf16.msra.mxu0 0
  %501 = vmatprep.subr.bf16.mxu0 0
  %502 = vmatpush1.bf16.msra.mxu0 0
  %503 = vmatprep.mubr.bf16.mxu0 0
  %504 = vmatmul.mubr.bf16.gmra.mrb[0].mxu0 %v466
  %v505 = vpop.f32.mrb[0].mxu0
  %v506 = vadd.f32 0.0, %v505
  %v507 = vpop.f32.mrb[0].mxu0
  %v508 = vpop.f32.mrb[0].mxu0
  %v509 = vadd.f32 0.0, %v508
  %v510 = vpop.f32.mrb[0].mxu0
  %511 = vmatprep.mubr.bf16.mxu0 0
  %512 = vmatmul.mubr.bf16.gmra.mrb[0].mxu0 %v469
  %v513 = vpop.f32.mrb[0].mxu0
  %v514 = vadd.f32 0.0, %v513
  %v515 = vpop.f32.mrb[0].mxu0
  %v516 = vpop.f32.mrb[0].mxu0
  %v517 = vadd.f32 0.0, %v516
  %v518 = vpop.f32.mrb[0].mxu0
  %519 = vdwg.mxu0
  %v520 = vadd.f32 %v346, %v506
  %v521 = vadd.f32 %v349, %v509
  %v522 = vadd.f32 %v354, %v514
  %v523 = vadd.f32 %v357, %v517
  %v524 = vld [vmem:[%s3] sm:$0x1]
  %v526 = vlaneseq
  %v527 = vshrl.u32 %v526, 7
  %v528 = vsub.s32 0, %v527
  %v529 = vrot.slane %v524, %v528
  %v531 = vadd.f32 %v520, %v529
  %v532 = vadd.f32 %v521, %v529
  %v533 = vadd.f32 %v522, %v529
  %v534 = vadd.f32 %v523, %v529
  %v535 = vadd.f32 %v531, %v532
  %v536 = vadd.f32 %v535, %v533
  %v537 = vadd.f32 %v536, %v534
  %v538 = vrot.slane %v537, 4
  %v539 = vadd.f32 %v537, %v538
  %v540 = vrot.slane %v539, 2
  %v541 = vadd.f32 %v539, %v540
  %v542 = vrot.slane %v541, 1
  %v543 = vadd.f32 %v541, %v542
  %544 = vrot.lane.b32.xlu0 %v543, 64
  %v545 = vpop.permute.xlu0 %544
  %v546 = vadd.f32 %v543, %v545
  %547 = vrot.lane.b32.xlu0 %v546, 32
  %v548 = vpop.permute.xlu0 %547
  %v549 = vadd.f32 %v546, %v548
  %550 = vrot.lane.b32.xlu0 %v549, 16
  %v551 = vpop.permute.xlu0 %550
  %v552 = vadd.f32 %v549, %v551
  %553 = vrot.lane.b32.xlu0 %v552, 8
  %v554 = vpop.permute.xlu0 %553
  %v555 = vadd.f32 %v552, %v554
  %v556 = vmul.f32 %v555, 0.001953125
  %v557 = vlaneseq
  %v558 = vshrl.u32 %v557, 7
  %v559 = vsub.s32 0, %v558
  %v560 = vrot.slane %v556, %v559
  %v561 = vsub.f32 %v531, %v560
  %v562 = vsub.f32 %v532, %v560
  %v563 = vsub.f32 %v533, %v560
  %v564 = vsub.f32 %v534, %v560
  %v565 = vmul.f32 %v561, %v561
  %v566 = vmul.f32 %v562, %v562
  %v567 = vmul.f32 %v563, %v563
  %v568 = vmul.f32 %v564, %v564
  %v569 = vadd.f32 %v565, %v566
  %v570 = vadd.f32 %v569, %v567
  %v571 = vadd.f32 %v570, %v568
  %v572 = vrot.slane %v571, 4
  %v573 = vadd.f32 %v571, %v572
  %v574 = vrot.slane %v573, 2
  %v575 = vadd.f32 %v573, %v574
  %v576 = vrot.slane %v575, 1
  %v577 = vadd.f32 %v575, %v576
  %578 = vrot.lane.b32.xlu0 %v577, 64
  %v579 = vpop.permute.xlu0 %578
  %v580 = vadd.f32 %v577, %v579
  %581 = vrot.lane.b32.xlu0 %v580, 32
  %v582 = vpop.permute.xlu0 %581
  %v583 = vadd.f32 %v580, %v582
  %584 = vrot.lane.b32.xlu0 %v583, 16
  %v585 = vpop.permute.xlu0 %584
  %v586 = vadd.f32 %v583, %v585
  %587 = vrot.lane.b32.xlu0 %v586, 8
  %v588 = vpop.permute.xlu0 %587
  %v589 = vadd.f32 %v586, %v588
  %v590 = vmul.f32 %v589, 0.001953125
  %v591 = vld [vmem:[%s4] sm:$0x1]
  %v592 = vadd.f32 %v590, 1e-05
  %v593 = vrsqrt.pop %v592
  %v594 = vmul.f32 %v591, %v593
  %v596 = vlaneseq
  %v597 = vshrl.u32 %v596, 7
  %v598 = vsub.s32 0, %v597
  %v599 = vrot.slane %v594, %v598
  %v601 = vmul.f32 %v561, %v599
  %v602 = vmul.f32 %v562, %v599
  %v603 = vmul.f32 %v563, %v599
  %v604 = vmul.f32 %v564, %v599
  %v605 = vld [vmem:[%s5] sm:$0x1]
  %v607 = vlaneseq
  %v608 = vshrl.u32 %v607, 7
  %v609 = vsub.s32 0, %v608
  %v610 = vrot.slane %v605, %v609
  %v612 = vadd.f32 %v601, %v610
  %v613 = vadd.f32 %v602, %v610
  %v614 = vadd.f32 %v603, %v610
  %v615 = vadd.f32 %v604, %v610
  %v616 = vmax.f32 %v612, 0.0
  %v617 = vmax.f32 %v613, 0.0
  %v618 = vmax.f32 %v614, 0.0
  %v619 = vmax.f32 %v615, 0.0
  %620 = vst [vmem:[%s6] sm:$0xff] %v616
  %621 = vst [vmem:[%s6 + $0x8] sm:$0xff] %v617
  %622 = vst [vmem:[%s6 + $0x10] sm:$0xff] %v618
  %623 = vst [vmem:[%s6 + $0x18] sm:$0xff] %v619
  // Predicated region
  $region26: #{conv_block.1} parent=0 // pred_check
    _
  $region27: #{conv_block.1} parent=0 // pred_check_branch
    %625 = sbr.rel (0) target = $region29
  $region28: #{conv_block.1} parent=0 // pred_region
    _
  $region29: #{conv_block.1} parent=0 // pred_fallthru
    _
  // Predicated region
  $region30: #{conv_block.1} parent=0 // pred_check
    _
  $region31: #{conv_block.1} parent=0 // pred_check_branch
    %627 = sbr.rel (0) target = $region33
  $region32: #{conv_block.1} parent=0 // pred_region
    _
  $region33: #{conv_block.1} parent=0 // pred_fallthru
    _

</llo_original>
